<compile_context>
chip_gen: v6e
topology: v6e:2x2x1
jax: 0.10.0
libtpu: 0.0.40
codegen_flags: <defaults>
</compile_context>

<pallas_src>
import jax
import jax.numpy as jnp
from jax.experimental import pallas as pl
from jax.experimental.pallas import tpu as pltpu


def pair_graph_kernel(x_ref, wyg_ref, wo_ref, out_ref):
    # One batch element per grid step; channels-first (C, N) layout.
    x = x_ref[0]                        # (C, N)
    wyg = wyg_ref[...]                  # (2*Ci, C)  = [wy; wg]
    wo = wo_ref[...]                    # (C, Ci)
    ci = wo.shape[1]

    # ---- fused 1x1 convs: one channel matmul, then static sublane slices ----
    yg = jnp.dot(wyg, x, preferred_element_type=jnp.float32)   # (2*Ci, N)
    y = yg[:ci]                                                # (Ci, N)
    g = yg[ci:]                                                # (Ci, N)

    # ---- per-pixel L2 normalization of y over channels (axis 0) ----
    nrm2 = jnp.sum(y * y, axis=0, keepdims=True)               # (1, N)
    inv = 1.0 / (jnp.sqrt(nrm2) + 1e-12)
    y = y * inv
    # diag(coef) = ||y_norm||^2, computed in closed form (no extra reduction).
    diagc = nrm2 * inv * inv                                   # (1, N)

    # ---- pairwise affinity: coef = relu(y^T y), (N, N), exactly symmetric ----
    coef = jnp.maximum(
        jnp.dot(y.T, y, preferred_element_type=jnp.float32), 0.0)

    # ---- degree on the VPU: column sums of coef minus its diagonal.
    #      (symmetry => equals the reference's masked row sums of adja) ----
    totalsum = jnp.sum(coef, axis=0, keepdims=True)            # (1, N)
    deg = totalsum - diagc                                     # (1, N)
    s = jax.lax.rsqrt(jnp.where(deg > 0.001, deg, 1.0))        # (1, N)

    # ---- graph propagation without materializing adja or f:
    #      adja = coef - diag(diagc),  f = diag(s)(diag(deg) - adja)diag(s)
    #      o = g @ f = (gs*(deg + diagc) - gs@coef) * s
    #               = (gs*totalsum - gs@coef) * s ----
    gs = g * s                                                 # (Ci, N)
    # Stream the NxN operand as the MXU LHS; coef symmetric => gs@coef = (coef@gs.T).T
    p = jnp.dot(coef, gs.T, preferred_element_type=jnp.float32)  # (N, Ci)
    t = gs * totalsum - p.T                                    # (Ci, N)
    o = t * s                                                  # (Ci, N)

    # ---- output 1x1 conv + residual ----
    out_ref[0] = x + jnp.dot(wo, o, preferred_element_type=jnp.float32)


def pair_graph(x_nchw, wy, wg, wo):
    """x_nchw: (b, C, H, W) float32. Returns (b, C, H, W)."""
    b, C, H, W = x_nchw.shape
    N = H * W
    Ci = wy.shape[0]

    # Channels-first flattened layout: no transposes needed, lane dim = N.
    x_flat = x_nchw.reshape(b, C, N)

    # Fuse the two input 1x1 conv weights into a single (2*Ci, C) matrix.
    wyg = jnp.concatenate([wy, wg], axis=0)

    # VMEM estimate: one live NxN (coef) + p, double-buffered x/out blocks,
    # skinny (Ci,N) intermediates, plus headroom for compiler scratch.
    est = (4 * (N * N + 2 * Ci * N)          # coef + p
           + 4 * (2 * 2 * C * N)             # double-buffered x and out blocks
           + 4 * (8 * Ci * N)                # y/g/gs/t/o intermediates
           + (2 << 20))                      # headroom
    if est > 16 * 1024 * 1024:
        try:
            cap = pltpu.get_tpu_info().vmem_capacity_bytes
        except Exception:  # fall back to the smallest modern budget (v7x)
            cap = 64 * 1024 * 1024
        # Never request the whole physical VMEM (leave ~1/4 for the compiler);
        # on 128 MiB parts (v5e/v6e) this allows > 64 MiB when needed.
        vmem_limit = min(est, (3 * cap) // 4)
    else:
        vmem_limit = None

    out_flat = pl.pallas_call(
        pair_graph_kernel,
        out_shape=jax.ShapeDtypeStruct((b, C, N), x_flat.dtype),
        grid=(b,),
        in_specs=[
            pl.BlockSpec((1, C, N), lambda i: (i, 0, 0)),
            pl.BlockSpec((2 * Ci, C), lambda i: (0, 0)),
            pl.BlockSpec((C, Ci), lambda i: (0, 0)),
        ],
        out_specs=pl.BlockSpec((1, C, N), lambda i: (i, 0, 0)),
        compiler_params=pltpu.CompilerParams(
            dimension_semantics=("parallel",),
            vmem_limit_bytes=vmem_limit),
    )(x_flat, wyg, wo)

    return out_flat.reshape(b, C, H, W)


def pair_graph_ref(x, wy, wg, wo):
    """Plain-JAX mirror of the PyTorch forward (NCHW), for verification."""
    b, C, H, W = x.shape
    N = H * W
    Ci = wy.shape[0]
    xf = x.reshape(b, C, N)
    y = jnp.einsum('oc,bcn->bon', wy, xf)                     # self.y(x)
    y = y / (jnp.linalg.norm(y, axis=1, keepdims=True) + 1e-12)
    y1 = jnp.transpose(y, (0, 2, 1))
    coef = jnp.maximum(jnp.matmul(y1, y), 0.0)
    eye = jnp.eye(N, dtype=x.dtype)[None]
    adja = coef * (1.0 - eye)
    degree = jnp.sum(adja, axis=-1, keepdims=True) * eye
    temp = jnp.where(degree > 0.001, degree, jnp.ones_like(degree))
    norm = jax.lax.rsqrt(temp) * eye
    f = jnp.matmul(jnp.matmul(norm, degree - adja), norm)
    g = jnp.einsum('oc,bcn->bon', wg, xf)                     # self.g(x)
    o = jnp.matmul(g, f).reshape(b, Ci, H, W)
    o = jnp.einsum('co,bohw->bchw', wo, o)                    # self.o(o)
    return x + o


if __name__ == "__main__":
    b, C, H, W = 2, 32, 16, 16
    Ci = max(C // 16, 1)  # inter_channels default

    key = jax.random.PRNGKey(0)
    kx, ky, kg, ko = jax.random.split(key, 4)
    x = jax.random.normal(kx, (b, C, H, W), dtype=jnp.float32)
    wy = jax.random.normal(ky, (Ci, C), dtype=jnp.float32) * 0.1
    wg = jax.random.normal(kg, (Ci, C), dtype=jnp.float32) * 0.1
    # NOTE: the module zero-inits self.o (output would equal x); we use small
    # random weights so the full graph-reasoning path is exercised.
    wo = jax.random.normal(ko, (C, Ci), dtype=jnp.float32) * 0.1

    out = jax.block_until_ready(pair_graph(x, wy, wg, wo))
    ref = jax.block_until_ready(pair_graph_ref(x, wy, wg, wo))

    assert out.shape == (b, C, H, W)
    max_err = float(jnp.max(jnp.abs(out - ref)))
    assert jnp.allclose(out, ref, rtol=1e-4, atol=1e-4), max_err
    print("KERNEL_OK")
</pallas_src>

<mosaic_0001>
module attributes {stable_mosaic.version = 11 : i64} {
  func.func @pair_graph_kernel(%arg0: i32, %arg1: memref<1x32x256xf32, #tpu.memory_space<vmem>>, %arg2: memref<4x32xf32, #tpu.memory_space<vmem>>, %arg3: memref<32x2xf32, #tpu.memory_space<vmem>>, %arg4: memref<1x32x256xf32, #tpu.memory_space<vmem>>) attributes {dimension_semantics = [#tpu.dimension_semantics<parallel>], iteration_bounds = array<i64: 2>, scalar_prefetch = 0 : i64, scratch_operands = 0 : i64, tpu.core_type = #tpu.core_type<tc>, window_params = [{transform_indices = @transform_0, window_bounds = array<i64: 1, 32, 256>}, {pipeline_mode = #tpu.pipeline_mode<synchronous>, transform_indices = @transform_1, window_bounds = array<i64: 4, 32>}, {pipeline_mode = #tpu.pipeline_mode<synchronous>, transform_indices = @transform_2, window_bounds = array<i64: 32, 2>}, {transform_indices = @transform_3, window_bounds = array<i64: 1, 32, 256>}]} {
    %c0 = arith.constant 0 : index
    %c0_0 = arith.constant 0 : index
    %c0_1 = arith.constant 0 : index
    %0 = vector.load %arg1[%c0, %c0_0, %c0_1] : memref<1x32x256xf32, #tpu.memory_space<vmem>>, vector<1x32x256xf32>
    %1 = vector.shape_cast %0 : vector<1x32x256xf32> to vector<32x256xf32>
    %c0_2 = arith.constant 0 : index
    %c0_3 = arith.constant 0 : index
    %2 = vector.load %arg2[%c0_2, %c0_3] : memref<4x32xf32, #tpu.memory_space<vmem>>, vector<4x32xf32>
    %c0_4 = arith.constant 0 : index
    %c0_5 = arith.constant 0 : index
    %3 = vector.load %arg3[%c0_4, %c0_5] : memref<32x2xf32, #tpu.memory_space<vmem>>, vector<32x2xf32>
    %cst = arith.constant dense<0.000000e+00> : vector<4x256xf32>
    %4 = tpu.matmul %2, %1, %cst {dimension_numbers = #tpu.dot_dimension_numbers<[1], [0], [0], [1], [0, 0, 1, 1], [], []>} : vector<4x32xf32>, vector<32x256xf32>, vector<4x256xf32> -> vector<4x256xf32>
    %5 = vector.extract_strided_slice %4 {offsets = [0, 0], sizes = [2, 256], strides = [1, 1]} : vector<4x256xf32> to vector<2x256xf32>
    %6 = vector.extract_strided_slice %4 {offsets = [2, 0], sizes = [2, 256], strides = [1, 1]} : vector<4x256xf32> to vector<2x256xf32>
    %7 = arith.mulf %5, %5 : vector<2x256xf32>
    %cst_6 = arith.constant dense<0.000000e+00> : vector<256xf32>
    %8 = vector.multi_reduction <add>, %7, %cst_6 [0] : vector<2x256xf32> to vector<256xf32>
    %9 = vector.shape_cast %8 : vector<256xf32> to vector<1x256xf32>
    %10 = math.sqrt %9 : vector<1x256xf32>
    %cst_7 = arith.constant 9.99999996E-13 : f32
    %11 = vector.broadcast %cst_7 : f32 to vector<1x256xf32>
    %12 = arith.addf %10, %11 : vector<1x256xf32>
    %cst_8 = arith.constant 1.000000e+00 : f32
    %13 = vector.broadcast %cst_8 : f32 to vector<1x256xf32>
    %14 = arith.divf %13, %12 : vector<1x256xf32>
    %15 = vector.broadcast %14 : vector<1x256xf32> to vector<2x256xf32>
    %16 = arith.mulf %5, %15 : vector<2x256xf32>
    %17 = arith.mulf %9, %14 : vector<1x256xf32>
    %18 = arith.mulf %17, %14 : vector<1x256xf32>
    %19 = tpu.transpose %16, [1, 0] : vector<2x256xf32> -> vector<256x2xf32>
    %cst_9 = arith.constant dense<0.000000e+00> : vector<256x256xf32>
    %20 = tpu.matmul %19, %16, %cst_9 {dimension_numbers = #tpu.dot_dimension_numbers<[1], [0], [0], [1], [0, 0, 1, 1], [], []>} : vector<256x2xf32>, vector<2x256xf32>, vector<256x256xf32> -> vector<256x256xf32>
    %cst_10 = arith.constant 0.000000e+00 : f32
    %21 = vector.broadcast %cst_10 : f32 to vector<256x256xf32>
    %22 = arith.maximumf %20, %21 : vector<256x256xf32>
    %cst_11 = arith.constant dense<0.000000e+00> : vector<256xf32>
    %23 = vector.multi_reduction <add>, %22, %cst_11 [0] : vector<256x256xf32> to vector<256xf32>
    %24 = vector.shape_cast %23 : vector<256xf32> to vector<1x256xf32>
    %25 = arith.subf %24, %18 : vector<1x256xf32>
    %cst_12 = arith.constant 1.000000e-03 : f32
    %26 = vector.broadcast %cst_12 : f32 to vector<1x256xf32>
    %27 = arith.cmpf ogt, %25, %26 : vector<1x256xf32>
    %cst_13 = arith.constant 1.000000e+00 : f32
    %28 = vector.broadcast %cst_13 : f32 to vector<1x256xf32>
    %29 = arith.select %27, %25, %28 : vector<1x256xi1>, vector<1x256xf32>
    %30 = math.rsqrt %29 : vector<1x256xf32>
    %31 = vector.broadcast %30 : vector<1x256xf32> to vector<2x256xf32>
    %32 = arith.mulf %6, %31 : vector<2x256xf32>
    %33 = tpu.transpose %32, [1, 0] : vector<2x256xf32> -> vector<256x2xf32>
    %cst_14 = arith.constant dense<0.000000e+00> : vector<256x2xf32>
    %34 = tpu.matmul %22, %33, %cst_14 {dimension_numbers = #tpu.dot_dimension_numbers<[1], [0], [0], [1], [0, 0, 1, 1], [], []>} : vector<256x256xf32>, vector<256x2xf32>, vector<256x2xf32> -> vector<256x2xf32>
    %35 = vector.broadcast %24 : vector<1x256xf32> to vector<2x256xf32>
    %36 = arith.mulf %32, %35 : vector<2x256xf32>
    %37 = tpu.transpose %34, [1, 0] : vector<256x2xf32> -> vector<2x256xf32>
    %38 = arith.subf %36, %37 : vector<2x256xf32>
    %39 = vector.broadcast %30 : vector<1x256xf32> to vector<2x256xf32>
    %40 = arith.mulf %38, %39 : vector<2x256xf32>
    %cst_15 = arith.constant dense<0.000000e+00> : vector<32x256xf32>
    %41 = tpu.matmul %3, %40, %cst_15 {dimension_numbers = #tpu.dot_dimension_numbers<[1], [0], [0], [1], [0, 0, 1, 1], [], []>} : vector<32x2xf32>, vector<2x256xf32>, vector<32x256xf32> -> vector<32x256xf32>
    %42 = arith.addf %1, %41 : vector<32x256xf32>
    %c0_16 = arith.constant 0 : index
    %c0_17 = arith.constant 0 : index
    %c0_18 = arith.constant 0 : index
    %43 = vector.load %arg4[%c0_16, %c0_17, %c0_18] : memref<1x32x256xf32, #tpu.memory_space<vmem>>, vector<1x32x256xf32>
    %44 = vector.shape_cast %43 : vector<1x32x256xf32> to vector<32x256xf32>
    %45 = vector.shape_cast %42 : vector<32x256xf32> to vector<1x32x256xf32>
    tpu.vector_store %arg4[%c0_16, %c0_17, %c0_18], %45 {strides = array<i32>} : memref<1x32x256xf32, #tpu.memory_space<vmem>>, vector<1x32x256xf32>,
    return
  }
  func.func @transform_0(%arg0: i32) -> (i32, i32, i32) {
    %c0_i32 = arith.constant 0 : i32
    %c0_i32_0 = arith.constant 0 : i32
    %c0_i32_1 = arith.constant 0 : i32
    return %arg0, %c0_i32, %c0_i32_0 : i32, i32, i32
  }
  func.func @transform_1(%arg0: i32) -> (i32, i32) {
    %c0_i32 = arith.constant 0 : i32
    %c0_i32_0 = arith.constant 0 : i32
    %c0_i32_1 = arith.constant 0 : i32
    return %c0_i32, %c0_i32_0 : i32, i32
  }
  func.func @transform_2(%arg0: i32) -> (i32, i32) {
    %c0_i32 = arith.constant 0 : i32
    %c0_i32_0 = arith.constant 0 : i32
    %c0_i32_1 = arith.constant 0 : i32
    return %c0_i32, %c0_i32_0 : i32, i32
  }
  func.func @transform_3(%arg0: i32) -> (i32, i32, i32) {
    %c0_i32 = arith.constant 0 : i32
    %c0_i32_0 = arith.constant 0 : i32
    %c0_i32_1 = arith.constant 0 : i32
    return %arg0, %c0_i32, %c0_i32_0 : i32, i32, i32
  }
}

</mosaic_0001>

<llo_original>
// kernel: tpu_custom_call.1
$region0: #{tpu_custom_call.1}
  #allocation0 [shape = 'u32[]', space=smem, size = 0x4, offset = 0x4, fixed_abs, tag = 'smem constant byte address 0x4 - core index']
  #allocation1 [shape = 'u32[144,128]{1,0:T(1,128)}', space=vmem, size = 0x12000, scoped, tag = 'internal scratch']
  %s0 = inlined_call_operand.hbm [shape: f32[2,32,256], index: 0, kind: input, shape index: {}]
  %s1 = inlined_call_operand.vmem [shape: f32[4,32], index: 1, kind: input, shape index: {}]
  %s2 = inlined_call_operand.vmem [shape: f32[32,2], index: 2, kind: input, shape index: {}]
  %s3 = inlined_call_operand.hbm [shape: f32[2,32,256], index: 3, kind: output, shape index: {}]
  %s4 = sld [smem:[#allocation0]]
  $region49: #{tpu_custom_call.1} parent=0
    _
  %s6 = ssub.s32 1, %s4
  %s7 = scalar_select 0, %s6, %s4
  $region1: #{tpu_custom_call.1} parent=0
    #allocation2 [shape = 'u8[65536]{0}', space=vmem, size = 0x10000, scoped, tag = 'input window, operand 0']
    #allocation3 [shape = 's32[2]{0}', space=sflag, size = 0x8, scoped, tag = 'scoped memory for tpu_custom_call.1']
    #allocation4 [shape = 's32[2]{0}', space=sflag, size = 0x8, scoped, tag = 'scoped memory for tpu_custom_call.1']
    #allocation5 [shape = 'u8[65536]{0}', space=vmem, size = 0x10000, scoped, tag = 'output window, operand 0']
    %8 = vsyncpa [#allocation3], 0
    %s9 = scalar_lea.sflag [#allocation3], 1
    %10 = vsyncpa %s9, 0
    %11 = vsyncpa [#allocation4], 0
    %s12 = scalar_lea.sflag [#allocation4], 1
    %13 = vsyncpa %s12, 0
    loop: start=0, step=1, limit=4
    $region2: #{tpu_custom_call.1} parent=1 // loop_pre_header
      _
    $region3: #{tpu_custom_call.1} parent=1 // loop_header
      %s15 = sphi 0, %s19
      %p16 = scmp.ge.s32.totalorder %s15, 4
      %s25 = sphi 0, %s27
      %s28 = sphi 0, %s25
      %s29 = sphi 0, %s28
      %s45 = sphi 0, %s29
      %s49 = sphi 0, %s49
      %s51 = sphi 0, %s49
      %s52 = sphi 0, %s51
      %s66 = sphi 0, %s52
      %s70 = sphi 0, %s70
      %s72 = sphi 0, %s70
      %s73 = sphi 0, %s72
      %s87 = sphi 0, %s73
      %s93 = sphi 0, %s95
      %s96 = sphi 0, %s93
      %s97 = sphi 0, %s96
      %s113 = sphi 0, %s97
    $region4: #{tpu_custom_call.1} parent=1 // loop_header_branch
      %18 = sbr.rel (%p16) target = $region8
    $region5: #{tpu_custom_call.1} parent=1 // loop_body
      %s20 = ssub.s32 %s15, 1
      %s21 = ssub.s32 %s15, 2
      %s22 = sadd.s32 %s15, 1
      %s23 = ssub.s32 %s15, %s22
      %p24 = scmp.eq.s32.totalorder %s23, 0
      %s26 = sadd.s32 %s25, 1
      %s27 = scalar_select %p24, %s25, %s26
      %p30 = pneg %p24
      %p31 = scmp.eq.s32.totalorder %s15, 1
      %p32 = por %p30, %p31
      %p33 = scmp.ne.s32.totalorder %s25, %s28
      %p34 = scmp.eq.s32.totalorder %s15, 0
      %p35 = por %p33, %p34
      %p36 = scmp.ne.s32.totalorder %s25, %s28
      %p37 = scmp.eq.s32.totalorder %s20, 1
      %p38 = por %p36, %p37
      %p39 = scmp.ne.s32.totalorder %s28, %s29
      %p40 = scmp.eq.s32.totalorder %s20, 0
      %p41 = por %p39, %p40
      %p42 = scmp.ne.s32.totalorder %s28, %s29
      %p43 = scmp.eq.s32.totalorder %s21, 1
      %p44 = por %p42, %p43
      %p46 = scmp.ne.s32.totalorder %s29, %s45
      %p47 = scmp.eq.s32.totalorder %s21, 0
      %p48 = por %p46, %p47
      %s50 = sadd.s32 %s49, 1
      %p53 = scmp.eq.s32.totalorder %s15, 1
      %p54 = scmp.ne.s32.totalorder %s49, %s51
      %p55 = scmp.eq.s32.totalorder %s15, 0
      %p56 = por %p54, %p55
      %p57 = scmp.ne.s32.totalorder %s49, %s51
      %p58 = scmp.eq.s32.totalorder %s20, 1
      %p59 = por %p57, %p58
      %p60 = scmp.ne.s32.totalorder %s51, %s52
      %p61 = scmp.eq.s32.totalorder %s20, 0
      %p62 = por %p60, %p61
      %p63 = scmp.ne.s32.totalorder %s51, %s52
      %p64 = scmp.eq.s32.totalorder %s21, 1
      %p65 = por %p63, %p64
      %p67 = scmp.ne.s32.totalorder %s52, %s66
      %p68 = scmp.eq.s32.totalorder %s21, 0
      %p69 = por %p67, %p68
      %s71 = sadd.s32 %s70, 1
      %p74 = scmp.eq.s32.totalorder %s15, 1
      %p75 = scmp.ne.s32.totalorder %s70, %s72
      %p76 = scmp.eq.s32.totalorder %s15, 0
      %p77 = por %p75, %p76
      %p78 = scmp.ne.s32.totalorder %s70, %s72
      %p79 = scmp.eq.s32.totalorder %s20, 1
      %p80 = por %p78, %p79
      %p81 = scmp.ne.s32.totalorder %s72, %s73
      %p82 = scmp.eq.s32.totalorder %s20, 0
      %p83 = por %p81, %p82
      %p84 = scmp.ne.s32.totalorder %s72, %s73
      %p85 = scmp.eq.s32.totalorder %s21, 1
      %p86 = por %p84, %p85
      %p88 = scmp.ne.s32.totalorder %s73, %s87
      %p89 = scmp.eq.s32.totalorder %s21, 0
      %p90 = por %p88, %p89
      %s91 = ssub.s32 %s15, %s22
      %p92 = scmp.eq.s32.totalorder %s91, 0
      %s94 = sadd.s32 %s93, 1
      %s95 = scalar_select %p92, %s93, %s94
      %p98 = pneg %p92
      %p99 = scmp.eq.s32.totalorder %s15, 1
      %p100 = por %p98, %p99
      %p101 = scmp.ne.s32.totalorder %s93, %s96
      %p102 = scmp.eq.s32.totalorder %s15, 0
      %p103 = por %p101, %p102
      %p104 = scmp.ne.s32.totalorder %s93, %s96
      %p105 = scmp.eq.s32.totalorder %s20, 1
      %p106 = por %p104, %p105
      %p107 = scmp.ne.s32.totalorder %s96, %s97
      %p108 = scmp.eq.s32.totalorder %s20, 0
      %p109 = por %p107, %p108
      %p110 = scmp.ne.s32.totalorder %s96, %s97
      %p111 = scmp.eq.s32.totalorder %s21, 1
      %p112 = por %p110, %p111
      %p114 = scmp.ne.s32.totalorder %s97, %s113
      %p115 = scmp.eq.s32.totalorder %s21, 0
      %p116 = por %p114, %p115
      %p117 = scmp.le.s32.totalorder 1, %s15
      %p118 = scmp.lt.s32.totalorder %s15, 3
      %p119 = pnand %p117, %p118
      %p120 = pneg %p119
      // Predicated region
      $region9: #{tpu_custom_call.1} parent=5 // pred_check
        _
      $region10: #{tpu_custom_call.1} parent=5 // pred_check_branch
        %122 = sbr.rel (%p119) target = $region12
      $region11: #{tpu_custom_call.1} parent=5 // pred_region
        %s123 = ssub.s32 %s15, 1
        // Predicated region
        $region13: #{tpu_custom_call.1} parent=11 // pred_check
          %p124 = pneg %p62
        $region14: #{tpu_custom_call.1} parent=11 // pred_check_branch
          %126 = sbr.rel (%p124) target = $region16
        $region15: #{tpu_custom_call.1} parent=11 // pred_region
          _
        $region16: #{tpu_custom_call.1} parent=11 // pred_fallthru
          _
        // Predicated region
        $region17: #{tpu_custom_call.1} parent=11 // pred_check
          %p127 = pneg %p83
        $region18: #{tpu_custom_call.1} parent=11 // pred_check_branch
          %129 = sbr.rel (%p127) target = $region20
        $region19: #{tpu_custom_call.1} parent=11 // pred_region
          _
        $region20: #{tpu_custom_call.1} parent=11 // pred_fallthru
          _
      $region12: #{tpu_custom_call.1} parent=5 // pred_fallthru
        _
      %p130 = scmp.lt.s32.totalorder %s15, 2
      // Predicated region
      $region21: #{tpu_custom_call.1} parent=5 // pred_check
        %p131 = pneg %p130
      $region22: #{tpu_custom_call.1} parent=5 // pred_check_branch
        %133 = sbr.rel (%p131) target = $region24
      $region23: #{tpu_custom_call.1} parent=5 // pred_region
        // Predicated region
        $region25: #{tpu_custom_call.1} parent=23 // pred_check
          %p134 = pneg %p35
        $region26: #{tpu_custom_call.1} parent=23 // pred_check_branch
          %136 = sbr.rel (%p134) target = $region28
        $region27: #{tpu_custom_call.1} parent=23 // pred_region
          %s137 = sand.u32 %s25, 1
          %s138 = scalar_lea.sflag [#allocation3], %s137
          %s139 = sand.u32 %s25, 1
          %s140 = smul.addr %s139, 64
          %s141 = scalar_lea.vmem [#allocation2], %s140
          %s143 = ssub.s32 1024, 1024
          %144 = vsyncadd %s138, %s143
          %s145 = smul.addr %s15, 8
          %s146 = smul.addr %s145, 128
          %s147 = scalar_lea.hbm %s0, %s146
          %s148 = sshll.u32 %s141, 4
          %s149 = int_to_ptr.vmem [resolvable:$true] %s148
          %154 = dma.hbm_to_vmem [thread:$0]  %s147, 1024, %s149, %s138, 256, 256, 16
        $region28: #{tpu_custom_call.1} parent=23 // pred_fallthru
          _
      $region24: #{tpu_custom_call.1} parent=5 // pred_fallthru
        _
      %p155 = scmp.le.s32.totalorder 1, %s15
      %p156 = scmp.lt.s32.totalorder %s15, 3
      %p157 = pnand %p155, %p156
      %p158 = pneg %p157
      // Predicated region
      $region29: #{tpu_custom_call.1} parent=5 // pred_check
        _
      $region30: #{tpu_custom_call.1} parent=5 // pred_check_branch
        %160 = sbr.rel (%p157) target = $region32
      $region31: #{tpu_custom_call.1} parent=5 // pred_region
        %s161 = ssub.s32 %s15, 1
        %s162 = sand.u32 %s28, 1
        %s163 = scalar_lea.sflag [#allocation3], %s162
        %s164 = sand.u32 %s28, 1
        %s165 = smul.addr %s164, 64
        %s166 = scalar_lea.vmem [#allocation2], %s165
        // Predicated region
        $region33: #{tpu_custom_call.1} parent=31 // pred_check
          %p167 = pneg %p41
        $region34: #{tpu_custom_call.1} parent=31 // pred_check_branch
          %169 = sbr.rel (%p167) target = $region36
        $region35: #{tpu_custom_call.1} parent=31 // pred_region
          %170 = dma.done %s163, 1024
        $region36: #{tpu_custom_call.1} parent=31 // pred_fallthru
          _
        %s171 = sand.u32 %s28, 1
        %s172 = scalar_lea.sflag [#allocation3], %s171
        %s173 = sand.u32 %s28, 1
        %s174 = smul.addr %s173, 64
        %s175 = scalar_lea.vmem [#allocation2], %s174
        %p176 = pneg %p41
        %p177 = pneg %p38
        %p178 = pneg %p62
        %p179 = pneg %p59
        %p180 = pneg %p83
        %p181 = pneg %p80
        %p182 = pneg %p109
        %p183 = pneg %p106
        %s184 = sand.u32 %s96, 1
        %s185 = scalar_lea.sflag [#allocation4], %s184
        %s186 = sand.u32 %s96, 1
        %s187 = smul.addr %s186, 64
        %s188 = scalar_lea.vmem [#allocation5], %s187
        %v189 = vld [vmem:[%s166] sm:$0xff]
        %v190 = vld [vmem:[%s166 + $0x8] sm:$0xff]
        %v191 = vld [vmem:[%s166 + $0x10] sm:$0xff]
        %v192 = vld [vmem:[%s166 + $0x18] sm:$0xff]
        %v193 = vld [vmem:[%s166 + $0x20] sm:$0xff]
        %v194 = vld [vmem:[%s166 + $0x28] sm:$0xff]
        %v195 = vld [vmem:[%s166 + $0x30] sm:$0xff]
        %v196 = vld [vmem:[%s166 + $0x38] sm:$0xff]
        %v197 = vld [vmem:[%s1] sm:$0xf]
        %v198 = vld [vmem:[%s2] sm:$0xff]
        %v199 = vld [vmem:[%s2 + $0x8] sm:$0xff]
        %v200 = vld [vmem:[%s2 + $0x10] sm:$0xff]
        %v201 = vld [vmem:[%s2 + $0x18] sm:$0xff]
        %vm202 = vcmask 261120
        %v204 = vsel %vm202, %v197, 0
        %206 = vmatprep.subr.mxu0 0.0
        %207 = vmatpush1.msra.mxu0 0.0
        %208 = vmatprep.subr.mxu0 0.0
        %209 = vmatpush1.msra.mxu0 0.0
        %210 = vmatprep.subr.mxu0 0.0
        %211 = vmatpush1.msra.mxu0 0.0
        %212 = vmatprep.subr.mxu0 0.0
        %213 = vmatpush1.msra.mxu0 0.0
        %214 = vmatprep.subr.mxu0 0.0
        %215 = vmatpush1.msra.mxu0 0.0
        %216 = vmatprep.subr.mxu0 0.0
        %217 = vmatpush1.msra.mxu0 0.0
        %218 = vmatprep.subr.mxu0 0.0
        %219 = vmatpush1.msra.mxu0 0.0
        %220 = vmatprep.subr.mxu0 0.0
        %221 = vmatpush1.msra.mxu0 0.0
        %222 = vmatprep.subr.mxu0 0.0
        %223 = vmatpush1.msra.mxu0 0.0
        %224 = vmatprep.subr.mxu0 0.0
        %225 = vmatpush1.msra.mxu0 0.0
        %226 = vmatprep.subr.mxu0 0.0
        %227 = vmatpush1.msra.mxu0 0.0
        %228 = vmatprep.subr.mxu0 0.0
        %229 = vmatpush1.msra.mxu0 0.0
        %230 = vmatprep.subr.mxu0 %v196
        %231 = vmatpush1.msra.mxu0 %v195
        %232 = vmatprep.subr.mxu0 %v194
        %233 = vmatpush1.msra.mxu0 %v193
        %234 = vmatprep.subr.mxu0 %v192
        %235 = vmatpush1.msra.mxu0 %v191
        %236 = vmatprep.subr.mxu0 %v190
        %237 = vmatpush1.msra.mxu0 %v189
        %238 = vmatprep.subr.mxu0 0.0
        %239 = vmatpush2.msra.mxu0 0.0
        %240 = vmatprep.subr.mxu0 0.0
        %241 = vmatpush2.msra.mxu0 0.0
        %242 = vmatprep.subr.mxu0 0.0
        %243 = vmatpush2.msra.mxu0 0.0
        %244 = vmatprep.subr.mxu0 0.0
        %245 = vmatpush2.msra.mxu0 0.0
        %246 = vmatprep.subr.mxu0 0.0
        %247 = vmatpush2.msra.mxu0 0.0
        %248 = vmatprep.subr.mxu0 0.0
        %249 = vmatpush2.msra.mxu0 0.0
        %250 = vmatprep.subr.mxu0 0.0
        %251 = vmatpush2.msra.mxu0 0.0
        %252 = vmatprep.subr.mxu0 0.0
        %253 = vmatpush2.msra.mxu0 0.0
        %254 = vmatprep.subr.mxu0 0.0
        %255 = vmatpush2.msra.mxu0 0.0
        %256 = vmatprep.subr.mxu0 0.0
        %257 = vmatpush2.msra.mxu0 0.0
        %258 = vmatprep.subr.mxu0 0.0
        %259 = vmatpush2.msra.mxu0 0.0
        %260 = vmatprep.subr.mxu0 0.0
        %261 = vmatpush2.msra.mxu0 0.0
        %262 = vmatprep.subr.mxu0 0.0
        %263 = vmatpush2.msra.mxu0 0.0
        %264 = vmatprep.subr.mxu0 0.0
        %265 = vmatpush2.msra.mxu0 0.0
        %266 = vmatprep.subr.mxu0 0.0
        %267 = vmatpush2.msra.mxu0 0.0
        %268 = vmatprep.subr.mxu0 0.0
        %269 = vmatpush2.msra.mxu0 0.0
        %270 = vmatprep.mubr.f32.mxu0 0.0
        %271 = vmatmul.mubr.f32.gmra.mxu0 %v204
        %v272 = vpop.f32.mrf.mxu0
        %v273 = vadd.f32 0.0, %v272
        %v274 = vpop.f32.mrf.mxu0
        %v275 = vadd.f32 0.0, %v274
        %276 = vdwg.mxu0
        %v277 = vmul.f32 %v273, %v273
        %v278 = vmul.f32 %v275, %v275
        %vm279 = vcmask 1041408
        %v280 = vsel %vm279, %v277, 0.0
        %v281 = vrot.slane %v280, 4
        %v282 = vadd.f32 %v280, %v281
        %v283 = vrot.slane %v282, 2
        %v284 = vadd.f32 %v282, %v283
        %v285 = vrot.slane %v284, 1
        %v286 = vadd.f32 %v284, %v285
        %v287 = vsel %vm279, %v278, 0.0
        %v288 = vrot.slane %v287, 4
        %v289 = vadd.f32 %v287, %v288
        %v290 = vrot.slane %v289, 2
        %v291 = vadd.f32 %v289, %v290
        %v292 = vrot.slane %v291, 1
        %v293 = vadd.f32 %v291, %v292
        %v294 = vrsqrt.pop %v286
        %v295 = vmul.f32 %v286, %v294
        %vm296 = vcmp.eq.f32.partialorder %v286, inf
        %v297 = vsel %vm296, %v286, %v295
        %vm298 = vcmp.eq.f32.partialorder %v286, 0.0
        %v299 = vand.u32 %v286, 2147483648
        %v300 = vsel %vm298, %v299, %v297
        %v301 = vrsqrt.pop %v293
        %v302 = vmul.f32 %v293, %v301
        %vm303 = vcmp.eq.f32.partialorder %v293, inf
        %v304 = vsel %vm303, %v293, %v302
        %vm305 = vcmp.eq.f32.partialorder %v293, 0.0
        %v306 = vand.u32 %v293, 2147483648
        %v307 = vsel %vm305, %v306, %v304
        %v308 = vadd.f32 %v300, 1e-12
        %v309 = vadd.f32 %v307, 1e-12
        %v310 = vrcp.pop %v308
        %v311 = vmul.f32 1.0, %v310
        %v312 = vrcp.pop %v309
        %v313 = vmul.f32 1.0, %v312
        %v314 = vmul.f32 %v273, %v311
        %v315 = vmul.f32 %v275, %v313
        %v316 = vmul.f32 %v286, %v311
        %v317 = vmul.f32 %v293, %v313
        %v318 = vmul.f32 %v316, %v311
        %v319 = vmul.f32 %v317, %v313
        %320 = vxpose.xlu0.b32.start [1/16] %v314, 128
        %321 = vxpose.xlu0.b32.cont [2/16] 0.0, 128
        %322 = vxpose.xlu0.b32.cont [3/16] 0.0, 128
        %323 = vxpose.xlu0.b32.cont [4/16] 0.0, 128
        %324 = vxpose.xlu0.b32.cont [5/16] 0.0, 128
        %325 = vxpose.xlu0.b32.cont [6/16] 0.0, 128
        %326 = vxpose.xlu0.b32.cont [7/16] 0.0, 128
        %327 = vxpose.xlu0.b32.cont [8/16] 0.0, 128
        %328 = vxpose.xlu0.b32.cont [9/16] 0.0, 128
        %329 = vxpose.xlu0.b32.cont [10/16] 0.0, 128
        %330 = vxpose.xlu0.b32.cont [11/16] 0.0, 128
        %331 = vxpose.xlu0.b32.cont [12/16] 0.0, 128
        %332 = vxpose.xlu0.b32.cont [13/16] 0.0, 128
        %333 = vxpose.xlu0.b32.cont [14/16] 0.0, 128
        %334 = vxpose.xlu0.b32.cont [15/16] 0.0, 128
        %335 = vxpose.xlu0.b32.end [16/16] 0.0, 128
        %v336 = vpop.trf.xlu0
        %v337 = vpop.trf.xlu0
        %v338 = vpop.trf.xlu0
        %v339 = vpop.trf.xlu0
        %v340 = vpop.trf.xlu0
        %v341 = vpop.trf.xlu0
        %v342 = vpop.trf.xlu0
        %v343 = vpop.trf.xlu0
        %v344 = vpop.trf.xlu0
        %v345 = vpop.trf.xlu0
        %v346 = vpop.trf.xlu0
        %v347 = vpop.trf.xlu0
        %v348 = vpop.trf.xlu0
        %v349 = vpop.trf.xlu0
        %v350 = vpop.trf.xlu0
        %v351 = vpop.trf.xlu0
        %352 = vxpose.xlu0.b32.start [1/16] %v315, 128
        %353 = vxpose.xlu0.b32.cont [2/16] 0.0, 128
        %354 = vxpose.xlu0.b32.cont [3/16] 0.0, 128
        %355 = vxpose.xlu0.b32.cont [4/16] 0.0, 128
        %356 = vxpose.xlu0.b32.cont [5/16] 0.0, 128
        %357 = vxpose.xlu0.b32.cont [6/16] 0.0, 128
        %358 = vxpose.xlu0.b32.cont [7/16] 0.0, 128
        %359 = vxpose.xlu0.b32.cont [8/16] 0.0, 128
        %360 = vxpose.xlu0.b32.cont [9/16] 0.0, 128
        %361 = vxpose.xlu0.b32.cont [10/16] 0.0, 128
        %362 = vxpose.xlu0.b32.cont [11/16] 0.0, 128
        %363 = vxpose.xlu0.b32.cont [12/16] 0.0, 128
        %364 = vxpose.xlu0.b32.cont [13/16] 0.0, 128
        %365 = vxpose.xlu0.b32.cont [14/16] 0.0, 128
        %366 = vxpose.xlu0.b32.cont [15/16] 0.0, 128
        %367 = vxpose.xlu0.b32.end [16/16] 0.0, 128
        %v368 = vpop.trf.xlu0
        %v369 = vpop.trf.xlu0
        %v370 = vpop.trf.xlu0
        %v371 = vpop.trf.xlu0
        %v372 = vpop.trf.xlu0
        %v373 = vpop.trf.xlu0
        %v374 = vpop.trf.xlu0
        %v375 = vpop.trf.xlu0
        %v376 = vpop.trf.xlu0
        %v377 = vpop.trf.xlu0
        %v378 = vpop.trf.xlu0
        %v379 = vpop.trf.xlu0
        %v380 = vpop.trf.xlu0
        %v381 = vpop.trf.xlu0
        %v382 = vpop.trf.xlu0
        %v383 = vpop.trf.xlu0
        %vm384 = vcmask 15360
        %v386 = vsel %vm384, %v336, 0
        %v389 = vsel %vm384, %v337, 0
        %v392 = vsel %vm384, %v338, 0
        %v395 = vsel %vm384, %v339, 0
        %v398 = vsel %vm384, %v340, 0
        %v401 = vsel %vm384, %v341, 0
        %v404 = vsel %vm384, %v342, 0
        %v407 = vsel %vm384, %v343, 0
        %v410 = vsel %vm384, %v344, 0
        %v413 = vsel %vm384, %v345, 0
        %v416 = vsel %vm384, %v346, 0
        %v419 = vsel %vm384, %v347, 0
        %v422 = vsel %vm384, %v348, 0
        %v425 = vsel %vm384, %v349, 0
        %v428 = vsel %vm384, %v350, 0
        %v431 = vsel %vm384, %v351, 0
        %v434 = vsel %vm384, %v368, 0
        %v437 = vsel %vm384, %v369, 0
        %v440 = vsel %vm384, %v370, 0
        %v443 = vsel %vm384, %v371, 0
        %v446 = vsel %vm384, %v372, 0
        %v449 = vsel %vm384, %v373, 0
        %v452 = vsel %vm384, %v374, 0
        %v455 = vsel %vm384, %v375, 0
        %v458 = vsel %vm384, %v376, 0
        %v461 = vsel %vm384, %v377, 0
        %v464 = vsel %vm384, %v378, 0
        %v467 = vsel %vm384, %v379, 0
        %v470 = vsel %vm384, %v380, 0
        %v473 = vsel %vm384, %v381, 0
        %v476 = vsel %vm384, %v382, 0
        %v479 = vsel %vm384, %v383, 0
        %v482 = vsel %vm279, %v314, 0
        %v485 = vsel %vm279, %v315, 0
        %487 = vmatprep.subr.mxu0 0.0
        %488 = vmatpush1.msra.mxu0 0.0
        %489 = vmatprep.subr.mxu0 0.0
        %490 = vmatpush1.msra.mxu0 0.0
        %491 = vmatprep.subr.mxu0 0.0
        %492 = vmatpush1.msra.mxu0 0.0
        %493 = vmatprep.subr.mxu0 0.0
        %494 = vmatpush1.msra.mxu0 0.0
        %495 = vmatprep.subr.mxu0 0.0
        %496 = vmatpush1.msra.mxu0 0.0
        %497 = vmatprep.subr.mxu0 0.0
        %498 = vmatpush1.msra.mxu0 0.0
        %499 = vmatprep.subr.mxu0 0.0
        %500 = vmatpush1.msra.mxu0 0.0
        %501 = vmatprep.subr.mxu0 0.0
        %502 = vmatpush1.msra.mxu0 0.0
        %503 = vmatprep.subr.mxu0 0.0
        %504 = vmatpush1.msra.mxu0 0.0
        %505 = vmatprep.subr.mxu0 0.0
        %506 = vmatpush1.msra.mxu0 0.0
        %507 = vmatprep.subr.mxu0 0.0
        %508 = vmatpush1.msra.mxu0 0.0
        %509 = vmatprep.subr.mxu0 0.0
        %510 = vmatpush1.msra.mxu0 0.0
        %511 = vmatprep.subr.mxu0 0.0
        %512 = vmatpush1.msra.mxu0 0.0
        %513 = vmatprep.subr.mxu0 0.0
        %514 = vmatpush1.msra.mxu0 0.0
        %515 = vmatprep.subr.mxu0 0.0
        %516 = vmatpush1.msra.mxu0 0.0
        %517 = vmatprep.subr.mxu0 %v485
        %518 = vmatpush1.msra.mxu0 %v482
        %519 = vmatprep.subr.mxu0 0.0
        %520 = vmatpush2.msra.mxu0 0.0
        %521 = vmatprep.subr.mxu0 0.0
        %522 = vmatpush2.msra.mxu0 0.0
        %523 = vmatprep.subr.mxu0 0.0
        %524 = vmatpush2.msra.mxu0 0.0
        %525 = vmatprep.subr.mxu0 0.0
        %526 = vmatpush2.msra.mxu0 0.0
        %527 = vmatprep.subr.mxu0 0.0
        %528 = vmatpush2.msra.mxu0 0.0
        %529 = vmatprep.subr.mxu0 0.0
        %530 = vmatpush2.msra.mxu0 0.0
        %531 = vmatprep.subr.mxu0 0.0
        %532 = vmatpush2.msra.mxu0 0.0
        %533 = vmatprep.subr.mxu0 0.0
        %534 = vmatpush2.msra.mxu0 0.0
        %535 = vmatprep.subr.mxu0 0.0
        %536 = vmatpush2.msra.mxu0 0.0
        %537 = vmatprep.subr.mxu0 0.0
        %538 = vmatpush2.msra.mxu0 0.0
        %539 = vmatprep.subr.mxu0 0.0
        %540 = vmatpush2.msra.mxu0 0.0
        %541 = vmatprep.subr.mxu0 0.0
        %542 = vmatpush2.msra.mxu0 0.0
        %543 = vmatprep.subr.mxu0 0.0
        %544 = vmatpush2.msra.mxu0 0.0
        %545 = vmatprep.subr.mxu0 0.0
        %546 = vmatpush2.msra.mxu0 0.0
        %547 = vmatprep.subr.mxu0 0.0
        %548 = vmatpush2.msra.mxu0 0.0
        %549 = vmatprep.subr.mxu0 0.0
        %550 = vmatpush2.msra.mxu0 0.0
        %551 = vmatprep.mubr.f32.mxu0 0.0
        %552 = vmatmul.mubr.f32.gmra.mxu0 %v386
        %v553 = vpop.f32.mrf.mxu0
        %v554 = vadd.f32 0.0, %v553
        %v555 = vpop.f32.mrf.mxu0
        %v556 = vadd.f32 0.0, %v555
        %557 = vmatprep.mubr.f32.mxu0 0.0
        %558 = vmatmul.mubr.f32.gmra.mxu0 %v389
        %v559 = vpop.f32.mrf.mxu0
        %v560 = vadd.f32 0.0, %v559
        %v561 = vpop.f32.mrf.mxu0
        %v562 = vadd.f32 0.0, %v561
        %563 = vmatprep.mubr.f32.mxu0 0.0
        %564 = vmatmul.mubr.f32.gmra.mxu0 %v392
        %v565 = vpop.f32.mrf.mxu0
        %v566 = vadd.f32 0.0, %v565
        %v567 = vpop.f32.mrf.mxu0
        %v568 = vadd.f32 0.0, %v567
        %569 = vmatprep.mubr.f32.mxu0 0.0
        %570 = vmatmul.mubr.f32.gmra.mxu0 %v395
        %v571 = vpop.f32.mrf.mxu0
        %v572 = vadd.f32 0.0, %v571
        %v573 = vpop.f32.mrf.mxu0
        %v574 = vadd.f32 0.0, %v573
        %575 = vmatprep.mubr.f32.mxu0 0.0
        %576 = vmatmul.mubr.f32.gmra.mxu0 %v398
        %v577 = vpop.f32.mrf.mxu0
        %v578 = vadd.f32 0.0, %v577
        %v579 = vpop.f32.mrf.mxu0
        %v580 = vadd.f32 0.0, %v579
        %581 = vmatprep.mubr.f32.mxu0 0.0
        %582 = vmatmul.mubr.f32.gmra.mxu0 %v401
        %v583 = vpop.f32.mrf.mxu0
        %v584 = vadd.f32 0.0, %v583
        %v585 = vpop.f32.mrf.mxu0
        %v586 = vadd.f32 0.0, %v585
        %587 = vmatprep.mubr.f32.mxu0 0.0
        %588 = vmatmul.mubr.f32.gmra.mxu0 %v404
        %v589 = vpop.f32.mrf.mxu0
        %v590 = vadd.f32 0.0, %v589
        %v591 = vpop.f32.mrf.mxu0
        %v592 = vadd.f32 0.0, %v591
        %593 = vmatprep.mubr.f32.mxu0 0.0
        %594 = vmatmul.mubr.f32.gmra.mxu0 %v407
        %v595 = vpop.f32.mrf.mxu0
        %v596 = vadd.f32 0.0, %v595
        %v597 = vpop.f32.mrf.mxu0
        %v598 = vadd.f32 0.0, %v597
        %599 = vmatprep.mubr.f32.mxu0 0.0
        %600 = vmatmul.mubr.f32.gmra.mxu0 %v410
        %v601 = vpop.f32.mrf.mxu0
        %v602 = vadd.f32 0.0, %v601
        %v603 = vpop.f32.mrf.mxu0
        %v604 = vadd.f32 0.0, %v603
        %605 = vmatprep.mubr.f32.mxu0 0.0
        %606 = vmatmul.mubr.f32.gmra.mxu0 %v413
        %v607 = vpop.f32.mrf.mxu0
        %v608 = vadd.f32 0.0, %v607
        %v609 = vpop.f32.mrf.mxu0
        %v610 = vadd.f32 0.0, %v609
        %611 = vmatprep.mubr.f32.mxu0 0.0
        %612 = vmatmul.mubr.f32.gmra.mxu0 %v416
        %v613 = vpop.f32.mrf.mxu0
        %v614 = vadd.f32 0.0, %v613
        %v615 = vpop.f32.mrf.mxu0
        %v616 = vadd.f32 0.0, %v615
        %617 = vmatprep.mubr.f32.mxu0 0.0
        %618 = vmatmul.mubr.f32.gmra.mxu0 %v419
        %v619 = vpop.f32.mrf.mxu0
        %v620 = vadd.f32 0.0, %v619
        %v621 = vpop.f32.mrf.mxu0
        %v622 = vadd.f32 0.0, %v621
        %623 = vmatprep.mubr.f32.mxu0 0.0
        %624 = vmatmul.mubr.f32.gmra.mxu0 %v422
        %v625 = vpop.f32.mrf.mxu0
        %v626 = vadd.f32 0.0, %v625
        %v627 = vpop.f32.mrf.mxu0
        %v628 = vadd.f32 0.0, %v627
        %629 = vmatprep.mubr.f32.mxu0 0.0
        %630 = vmatmul.mubr.f32.gmra.mxu0 %v425
        %v631 = vpop.f32.mrf.mxu0
        %v632 = vadd.f32 0.0, %v631
        %v633 = vpop.f32.mrf.mxu0
        %v634 = vadd.f32 0.0, %v633
        %635 = vmatprep.mubr.f32.mxu0 0.0
        %636 = vmatmul.mubr.f32.gmra.mxu0 %v428
        %v637 = vpop.f32.mrf.mxu0
        %v638 = vadd.f32 0.0, %v637
        %v639 = vpop.f32.mrf.mxu0
        %v640 = vadd.f32 0.0, %v639
        %641 = vmatprep.mubr.f32.mxu0 0.0
        %642 = vmatmul.mubr.f32.gmra.mxu0 %v431
        %v643 = vpop.f32.mrf.mxu0
        %v644 = vadd.f32 0.0, %v643
        %v645 = vpop.f32.mrf.mxu0
        %v646 = vadd.f32 0.0, %v645
        %647 = vmatprep.mubr.f32.mxu0 0.0
        %648 = vmatmul.mubr.f32.gmra.mxu0 %v434
        %v649 = vpop.f32.mrf.mxu0
        %v650 = vadd.f32 0.0, %v649
        %v651 = vpop.f32.mrf.mxu0
        %v652 = vadd.f32 0.0, %v651
        %653 = vmatprep.mubr.f32.mxu0 0.0
        %654 = vmatmul.mubr.f32.gmra.mxu0 %v437
        %v655 = vpop.f32.mrf.mxu0
        %v656 = vadd.f32 0.0, %v655
        %v657 = vpop.f32.mrf.mxu0
        %v658 = vadd.f32 0.0, %v657
        %659 = vmatprep.mubr.f32.mxu0 0.0
        %660 = vmatmul.mubr.f32.gmra.mxu0 %v440
        %v661 = vpop.f32.mrf.mxu0
        %v662 = vadd.f32 0.0, %v661
        %v663 = vpop.f32.mrf.mxu0
        %v664 = vadd.f32 0.0, %v663
        %665 = vmatprep.mubr.f32.mxu0 0.0
        %666 = vmatmul.mubr.f32.gmra.mxu0 %v443
        %v667 = vpop.f32.mrf.mxu0
        %v668 = vadd.f32 0.0, %v667
        %v669 = vpop.f32.mrf.mxu0
        %v670 = vadd.f32 0.0, %v669
        %671 = vmatprep.mubr.f32.mxu0 0.0
        %672 = vmatmul.mubr.f32.gmra.mxu0 %v446
        %v673 = vpop.f32.mrf.mxu0
        %v674 = vadd.f32 0.0, %v673
        %v675 = vpop.f32.mrf.mxu0
        %v676 = vadd.f32 0.0, %v675
        %677 = vmatprep.mubr.f32.mxu0 0.0
        %678 = vmatmul.mubr.f32.gmra.mxu0 %v449
        %v679 = vpop.f32.mrf.mxu0
        %v680 = vadd.f32 0.0, %v679
        %v681 = vpop.f32.mrf.mxu0
        %v682 = vadd.f32 0.0, %v681
        %683 = vmatprep.mubr.f32.mxu0 0.0
        %684 = vmatmul.mubr.f32.gmra.mxu0 %v452
        %v685 = vpop.f32.mrf.mxu0
        %v686 = vadd.f32 0.0, %v685
        %v687 = vpop.f32.mrf.mxu0
        %v688 = vadd.f32 0.0, %v687
        %689 = vmatprep.mubr.f32.mxu0 0.0
        %690 = vmatmul.mubr.f32.gmra.mxu0 %v455
        %v691 = vpop.f32.mrf.mxu0
        %v692 = vadd.f32 0.0, %v691
        %v693 = vpop.f32.mrf.mxu0
        %v694 = vadd.f32 0.0, %v693
        %695 = vmatprep.mubr.f32.mxu0 0.0
        %696 = vmatmul.mubr.f32.gmra.mxu0 %v458
        %v697 = vpop.f32.mrf.mxu0
        %v698 = vadd.f32 0.0, %v697
        %v699 = vpop.f32.mrf.mxu0
        %v700 = vadd.f32 0.0, %v699
        %701 = vmatprep.mubr.f32.mxu0 0.0
        %702 = vmatmul.mubr.f32.gmra.mxu0 %v461
        %v703 = vpop.f32.mrf.mxu0
        %v704 = vadd.f32 0.0, %v703
        %v705 = vpop.f32.mrf.mxu0
        %v706 = vadd.f32 0.0, %v705
        %707 = vmatprep.mubr.f32.mxu0 0.0
        %708 = vmatmul.mubr.f32.gmra.mxu0 %v464
        %v709 = vpop.f32.mrf.mxu0
        %v710 = vadd.f32 0.0, %v709
        %v711 = vpop.f32.mrf.mxu0
        %v712 = vadd.f32 0.0, %v711
        %713 = vmatprep.mubr.f32.mxu0 0.0
        %714 = vmatmul.mubr.f32.gmra.mxu0 %v467
        %v715 = vpop.f32.mrf.mxu0
        %v716 = vadd.f32 0.0, %v715
        %v717 = vpop.f32.mrf.mxu0
        %v718 = vadd.f32 0.0, %v717
        %719 = vmatprep.mubr.f32.mxu0 0.0
        %720 = vmatmul.mubr.f32.gmra.mxu0 %v470
        %v721 = vpop.f32.mrf.mxu0
        %v722 = vadd.f32 0.0, %v721
        %v723 = vpop.f32.mrf.mxu0
        %v724 = vadd.f32 0.0, %v723
        %725 = vmatprep.mubr.f32.mxu0 0.0
        %726 = vmatmul.mubr.f32.gmra.mxu0 %v473
        %v727 = vpop.f32.mrf.mxu0
        %v728 = vadd.f32 0.0, %v727
        %v729 = vpop.f32.mrf.mxu0
        %v730 = vadd.f32 0.0, %v729
        %731 = vmatprep.mubr.f32.mxu0 0.0
        %732 = vmatmul.mubr.f32.gmra.mxu0 %v476
        %v733 = vpop.f32.mrf.mxu0
        %v734 = vadd.f32 0.0, %v733
        %v735 = vpop.f32.mrf.mxu0
        %v736 = vadd.f32 0.0, %v735
        %737 = vmatprep.mubr.f32.mxu0 0.0
        %738 = vmatmul.mubr.f32.gmra.mxu0 %v479
        %v739 = vpop.f32.mrf.mxu0
        %v740 = vadd.f32 0.0, %v739
        %v741 = vpop.f32.mrf.mxu0
        %v742 = vadd.f32 0.0, %v741
        %743 = vdwg.mxu0
        %v744 = vmax.f32 %v554, 0.0
        %v745 = vmax.f32 %v556, 0.0
        %v746 = vmax.f32 %v560, 0.0
        %v747 = vmax.f32 %v562, 0.0
        %v748 = vmax.f32 %v566, 0.0
        %v749 = vmax.f32 %v568, 0.0
        %v750 = vmax.f32 %v572, 0.0
        %v751 = vmax.f32 %v574, 0.0
        %v752 = vmax.f32 %v578, 0.0
        %v753 = vmax.f32 %v580, 0.0
        %v754 = vmax.f32 %v584, 0.0
        %v755 = vmax.f32 %v586, 0.0
        %v756 = vmax.f32 %v590, 0.0
        %v757 = vmax.f32 %v592, 0.0
        %v758 = vmax.f32 %v596, 0.0
        %v759 = vmax.f32 %v598, 0.0
        %v760 = vmax.f32 %v602, 0.0
        %v761 = vmax.f32 %v604, 0.0
        %v762 = vmax.f32 %v608, 0.0
        %v763 = vmax.f32 %v610, 0.0
        %v764 = vmax.f32 %v614, 0.0
        %v765 = vmax.f32 %v616, 0.0
        %v766 = vmax.f32 %v620, 0.0
        %v767 = vmax.f32 %v622, 0.0
        %v768 = vmax.f32 %v626, 0.0
        %v769 = vmax.f32 %v628, 0.0
        %v770 = vmax.f32 %v632, 0.0
        %v771 = vmax.f32 %v634, 0.0
        %v772 = vmax.f32 %v638, 0.0
        %v773 = vmax.f32 %v640, 0.0
        %v774 = vmax.f32 %v644, 0.0
        %v775 = vmax.f32 %v646, 0.0
        %v776 = vmax.f32 %v650, 0.0
        %v777 = vmax.f32 %v652, 0.0
        %v778 = vmax.f32 %v656, 0.0
        %v779 = vmax.f32 %v658, 0.0
        %v780 = vmax.f32 %v662, 0.0
        %v781 = vmax.f32 %v664, 0.0
        %v782 = vmax.f32 %v668, 0.0
        %v783 = vmax.f32 %v670, 0.0
        %v784 = vmax.f32 %v674, 0.0
        %v785 = vmax.f32 %v676, 0.0
        %v786 = vmax.f32 %v680, 0.0
        %v787 = vmax.f32 %v682, 0.0
        %v788 = vmax.f32 %v686, 0.0
        %v789 = vmax.f32 %v688, 0.0
        %v790 = vmax.f32 %v692, 0.0
        %v791 = vmax.f32 %v694, 0.0
        %v792 = vmax.f32 %v698, 0.0
        %v793 = vmax.f32 %v700, 0.0
        %v794 = vmax.f32 %v704, 0.0
        %v795 = vmax.f32 %v706, 0.0
        %v796 = vmax.f32 %v710, 0.0
        %v797 = vmax.f32 %v712, 0.0
        %v798 = vmax.f32 %v716, 0.0
        %v799 = vmax.f32 %v718, 0.0
        %v800 = vmax.f32 %v722, 0.0
        %v801 = vmax.f32 %v724, 0.0
        %v802 = vmax.f32 %v728, 0.0
        %v803 = vmax.f32 %v730, 0.0
        %v804 = vmax.f32 %v734, 0.0
        %v805 = vmax.f32 %v736, 0.0
        %v806 = vmax.f32 %v740, 0.0
        %v807 = vmax.f32 %v742, 0.0
        %v808 = vadd.f32 %v744, %v746
        %v809 = vadd.f32 %v808, %v748
        %v810 = vadd.f32 %v809, %v750
        %v811 = vadd.f32 %v810, %v752
        %v812 = vadd.f32 %v811, %v754
        %v813 = vadd.f32 %v812, %v756
        %v814 = vadd.f32 %v813, %v758
        %v815 = vadd.f32 %v814, %v760
        %v816 = vadd.f32 %v815, %v762
        %v817 = vadd.f32 %v816, %v764
        %v818 = vadd.f32 %v817, %v766
        %v819 = vadd.f32 %v818, %v768
        %v820 = vadd.f32 %v819, %v770
        %v821 = vadd.f32 %v820, %v772
        %v822 = vadd.f32 %v821, %v774
        %v823 = vadd.f32 %v822, %v776
        %v824 = vadd.f32 %v823, %v778
        %v825 = vadd.f32 %v824, %v780
        %v826 = vadd.f32 %v825, %v782
        %v827 = vadd.f32 %v826, %v784
        %v828 = vadd.f32 %v827, %v786
        %v829 = vadd.f32 %v828, %v788
        %v830 = vadd.f32 %v829, %v790
        %v831 = vadd.f32 %v830, %v792
        %v832 = vadd.f32 %v831, %v794
        %v833 = vadd.f32 %v832, %v796
        %v834 = vadd.f32 %v833, %v798
        %v835 = vadd.f32 %v834, %v800
        %v836 = vadd.f32 %v835, %v802
        %v837 = vadd.f32 %v836, %v804
        %v838 = vadd.f32 %v837, %v806
        %v839 = vrot.slane %v838, 4
        %v840 = vadd.f32 %v838, %v839
        %v841 = vrot.slane %v840, 2
        %v842 = vadd.f32 %v840, %v841
        %v843 = vrot.slane %v842, 1
        %v844 = vadd.f32 %v842, %v843
        %v845 = vadd.f32 %v745, %v747
        %v846 = vadd.f32 %v845, %v749
        %v847 = vadd.f32 %v846, %v751
        %v848 = vadd.f32 %v847, %v753
        %v849 = vadd.f32 %v848, %v755
        %v850 = vadd.f32 %v849, %v757
        %v851 = vadd.f32 %v850, %v759
        %v852 = vadd.f32 %v851, %v761
        %v853 = vadd.f32 %v852, %v763
        %v854 = vadd.f32 %v853, %v765
        %v855 = vadd.f32 %v854, %v767
        %v856 = vadd.f32 %v855, %v769
        %v857 = vadd.f32 %v856, %v771
        %v858 = vadd.f32 %v857, %v773
        %v859 = vadd.f32 %v858, %v775
        %v860 = vadd.f32 %v859, %v777
        %v861 = vadd.f32 %v860, %v779
        %v862 = vadd.f32 %v861, %v781
        %v863 = vadd.f32 %v862, %v783
        %v864 = vadd.f32 %v863, %v785
        %v865 = vadd.f32 %v864, %v787
        %v866 = vadd.f32 %v865, %v789
        %v867 = vadd.f32 %v866, %v791
        %v868 = vadd.f32 %v867, %v793
        %v869 = vadd.f32 %v868, %v795
        %v870 = vadd.f32 %v869, %v797
        %v871 = vadd.f32 %v870, %v799
        %v872 = vadd.f32 %v871, %v801
        %v873 = vadd.f32 %v872, %v803
        %v874 = vadd.f32 %v873, %v805
        %v875 = vadd.f32 %v874, %v807
        %v876 = vrot.slane %v875, 4
        %v877 = vadd.f32 %v875, %v876
        %v878 = vrot.slane %v877, 2
        %v879 = vadd.f32 %v877, %v878
        %v880 = vrot.slane %v879, 1
        %v881 = vadd.f32 %v879, %v880
        %v882 = vsub.f32 %v844, %v318
        %v883 = vsub.f32 %v881, %v319
        %vm884 = vcmp.gt.f32.partialorder %v882, 0.001
        %vm885 = vcmp.gt.f32.partialorder %v883, 0.001
        %v886 = vsel %vm884, %v882, 1.0
        %v887 = vsel %vm885, %v883, 1.0
        %v888 = vrsqrt.pop %v886
        %v889 = vrsqrt.pop %v887
        %v890 = vmul.f32 %v273, %v888
        %v891 = vmul.f32 %v275, %v889
        %v894 = vrot.slane %v890, 2
        %v895 = vrot.slane %v891, 2
        %898 = vmatprep.subr.mxu0 0.0
        %899 = vmatpush1.xpose.msra.mxu0 0.0
        %900 = vmatprep.subr.mxu0 0.0
        %901 = vmatpush1.xpose.msra.mxu0 0.0
        %902 = vmatprep.subr.mxu0 0.0
        %903 = vmatpush1.xpose.msra.mxu0 0.0
        %904 = vmatprep.subr.mxu0 0.0
        %905 = vmatpush1.xpose.msra.mxu0 0.0
        %906 = vmatprep.subr.mxu0 0.0
        %907 = vmatpush1.xpose.msra.mxu0 0.0
        %908 = vmatprep.subr.mxu0 0.0
        %909 = vmatpush1.xpose.msra.mxu0 0.0
        %910 = vmatprep.subr.mxu0 0.0
        %911 = vmatpush1.xpose.msra.mxu0 0.0
        %912 = vmatprep.subr.mxu0 0.0
        %913 = vmatpush1.xpose.msra.mxu0 0.0
        %914 = vmatprep.subr.mxu0 0.0
        %915 = vmatpush1.xpose.msra.mxu0 0.0
        %916 = vmatprep.subr.mxu0 0.0
        %917 = vmatpush1.xpose.msra.mxu0 0.0
        %918 = vmatprep.subr.mxu0 0.0
        %919 = vmatpush1.xpose.msra.mxu0 0.0
        %920 = vmatprep.subr.mxu0 0.0
        %921 = vmatpush1.xpose.msra.mxu0 0.0
        %922 = vmatprep.subr.mxu0 0.0
        %923 = vmatpush1.xpose.msra.mxu0 0.0
        %924 = vmatprep.subr.mxu0 0.0
        %925 = vmatpush1.xpose.msra.mxu0 0.0
        %926 = vmatprep.subr.mxu0 0.0
        %927 = vmatpush1.xpose.msra.mxu0 0.0
        %928 = vmatprep.subr.mxu0 %v895
        %929 = vmatpush1.xpose.msra.mxu0 %v894
        %930 = vmatprep.subr.mxu0 0.0
        %931 = vmatpush2.xpose.msra.mxu0 0.0
        %932 = vmatprep.subr.mxu0 0.0
        %933 = vmatpush2.xpose.msra.mxu0 0.0
        %934 = vmatprep.subr.mxu0 0.0
        %935 = vmatpush2.xpose.msra.mxu0 0.0
        %936 = vmatprep.subr.mxu0 0.0
        %937 = vmatpush2.xpose.msra.mxu0 0.0
        %938 = vmatprep.subr.mxu0 0.0
        %939 = vmatpush2.xpose.msra.mxu0 0.0
        %940 = vmatprep.subr.mxu0 0.0
        %941 = vmatpush2.xpose.msra.mxu0 0.0
        %942 = vmatprep.subr.mxu0 0.0
        %943 = vmatpush2.xpose.msra.mxu0 0.0
        %944 = vmatprep.subr.mxu0 0.0
        %945 = vmatpush2.xpose.msra.mxu0 0.0
        %946 = vmatprep.subr.mxu0 0.0
        %947 = vmatpush2.xpose.msra.mxu0 0.0
        %948 = vmatprep.subr.mxu0 0.0
        %949 = vmatpush2.xpose.msra.mxu0 0.0
        %950 = vmatprep.subr.mxu0 0.0
        %951 = vmatpush2.xpose.msra.mxu0 0.0
        %952 = vmatprep.subr.mxu0 0.0
        %953 = vmatpush2.xpose.msra.mxu0 0.0
        %954 = vmatprep.subr.mxu0 0.0
        %955 = vmatpush2.xpose.msra.mxu0 0.0
        %956 = vmatprep.subr.mxu0 0.0
        %957 = vmatpush2.xpose.msra.mxu0 0.0
        %958 = vmatprep.subr.mxu0 0.0
        %959 = vmatpush2.xpose.msra.mxu0 0.0
        %960 = vmatprep.subr.mxu0 0.0
        %961 = vmatpush2.xpose.msra.mxu0 0.0
        %962 = vmatprep.mubr.f32.mxu0 %v745
        %963 = vmatmul.mubr.f32.gmra.mxu0 %v744
        %v964 = vpop.f32.mrf.mxu0
        %v965 = vadd.f32 0.0, %v964
        %v966 = vpop.f32.mrf.mxu0
        %967 = vmatprep.mubr.f32.mxu0 %v747
        %968 = vmatmul.mubr.f32.gmra.mxu0 %v746
        %v969 = vpop.f32.mrf.mxu0
        %v970 = vadd.f32 0.0, %v969
        %v971 = vpop.f32.mrf.mxu0
        %972 = vmatprep.mubr.f32.mxu0 %v749
        %973 = vmatmul.mubr.f32.gmra.mxu0 %v748
        %v974 = vpop.f32.mrf.mxu0
        %v975 = vadd.f32 0.0, %v974
        %v976 = vpop.f32.mrf.mxu0
        %977 = vmatprep.mubr.f32.mxu0 %v751
        %978 = vmatmul.mubr.f32.gmra.mxu0 %v750
        %v979 = vpop.f32.mrf.mxu0
        %v980 = vadd.f32 0.0, %v979
        %v981 = vpop.f32.mrf.mxu0
        %982 = vmatprep.mubr.f32.mxu0 %v753
        %983 = vmatmul.mubr.f32.gmra.mxu0 %v752
        %v984 = vpop.f32.mrf.mxu0
        %v985 = vadd.f32 0.0, %v984
        %v986 = vpop.f32.mrf.mxu0
        %987 = vmatprep.mubr.f32.mxu0 %v755
        %988 = vmatmul.mubr.f32.gmra.mxu0 %v754
        %v989 = vpop.f32.mrf.mxu0
        %v990 = vadd.f32 0.0, %v989
        %v991 = vpop.f32.mrf.mxu0
        %992 = vmatprep.mubr.f32.mxu0 %v757
        %993 = vmatmul.mubr.f32.gmra.mxu0 %v756
        %v994 = vpop.f32.mrf.mxu0
        %v995 = vadd.f32 0.0, %v994
        %v996 = vpop.f32.mrf.mxu0
        %997 = vmatprep.mubr.f32.mxu0 %v759
        %998 = vmatmul.mubr.f32.gmra.mxu0 %v758
        %v999 = vpop.f32.mrf.mxu0
        %v1000 = vadd.f32 0.0, %v999
        %v1001 = vpop.f32.mrf.mxu0
        %1002 = vmatprep.mubr.f32.mxu0 %v761
        %1003 = vmatmul.mubr.f32.gmra.mxu0 %v760
        %v1004 = vpop.f32.mrf.mxu0
        %v1005 = vadd.f32 0.0, %v1004
        %v1006 = vpop.f32.mrf.mxu0
        %1007 = vmatprep.mubr.f32.mxu0 %v763
        %1008 = vmatmul.mubr.f32.gmra.mxu0 %v762
        %v1009 = vpop.f32.mrf.mxu0
        %v1010 = vadd.f32 0.0, %v1009
        %v1011 = vpop.f32.mrf.mxu0
        %1012 = vmatprep.mubr.f32.mxu0 %v765
        %1013 = vmatmul.mubr.f32.gmra.mxu0 %v764
        %v1014 = vpop.f32.mrf.mxu0
        %v1015 = vadd.f32 0.0, %v1014
        %v1016 = vpop.f32.mrf.mxu0
        %1017 = vmatprep.mubr.f32.mxu0 %v767
        %1018 = vmatmul.mubr.f32.gmra.mxu0 %v766
        %v1019 = vpop.f32.mrf.mxu0
        %v1020 = vadd.f32 0.0, %v1019
        %v1021 = vpop.f32.mrf.mxu0
        %1022 = vmatprep.mubr.f32.mxu0 %v769
        %1023 = vmatmul.mubr.f32.gmra.mxu0 %v768
        %v1024 = vpop.f32.mrf.mxu0
        %v1025 = vadd.f32 0.0, %v1024
        %v1026 = vpop.f32.mrf.mxu0
        %1027 = vmatprep.mubr.f32.mxu0 %v771
        %1028 = vmatmul.mubr.f32.gmra.mxu0 %v770
        %v1029 = vpop.f32.mrf.mxu0
        %v1030 = vadd.f32 0.0, %v1029
        %v1031 = vpop.f32.mrf.mxu0
        %1032 = vmatprep.mubr.f32.mxu0 %v773
        %1033 = vmatmul.mubr.f32.gmra.mxu0 %v772
        %v1034 = vpop.f32.mrf.mxu0
        %v1035 = vadd.f32 0.0, %v1034
        %v1036 = vpop.f32.mrf.mxu0
        %1037 = vmatprep.mubr.f32.mxu0 %v775
        %1038 = vmatmul.mubr.f32.gmra.mxu0 %v774
        %v1039 = vpop.f32.mrf.mxu0
        %v1040 = vadd.f32 0.0, %v1039
        %v1041 = vpop.f32.mrf.mxu0
        %1042 = vmatprep.mubr.f32.mxu0 %v777
        %1043 = vmatmul.mubr.f32.gmra.mxu0 %v776
        %v1044 = vpop.f32.mrf.mxu0
        %v1045 = vadd.f32 0.0, %v1044
        %v1046 = vpop.f32.mrf.mxu0
        %1047 = vmatprep.mubr.f32.mxu0 %v779
        %1048 = vmatmul.mubr.f32.gmra.mxu0 %v778
        %v1049 = vpop.f32.mrf.mxu0
        %v1050 = vadd.f32 0.0, %v1049
        %v1051 = vpop.f32.mrf.mxu0
        %1052 = vmatprep.mubr.f32.mxu0 %v781
        %1053 = vmatmul.mubr.f32.gmra.mxu0 %v780
        %v1054 = vpop.f32.mrf.mxu0
        %v1055 = vadd.f32 0.0, %v1054
        %v1056 = vpop.f32.mrf.mxu0
        %1057 = vmatprep.mubr.f32.mxu0 %v783
        %1058 = vmatmul.mubr.f32.gmra.mxu0 %v782
        %v1059 = vpop.f32.mrf.mxu0
        %v1060 = vadd.f32 0.0, %v1059
        %v1061 = vpop.f32.mrf.mxu0
        %1062 = vmatprep.mubr.f32.mxu0 %v785
        %1063 = vmatmul.mubr.f32.gmra.mxu0 %v784
        %v1064 = vpop.f32.mrf.mxu0
        %v1065 = vadd.f32 0.0, %v1064
        %v1066 = vpop.f32.mrf.mxu0
        %1067 = vmatprep.mubr.f32.mxu0 %v787
        %1068 = vmatmul.mubr.f32.gmra.mxu0 %v786
        %v1069 = vpop.f32.mrf.mxu0
        %v1070 = vadd.f32 0.0, %v1069
        %v1071 = vpop.f32.mrf.mxu0
        %1072 = vmatprep.mubr.f32.mxu0 %v789
        %1073 = vmatmul.mubr.f32.gmra.mxu0 %v788
        %v1074 = vpop.f32.mrf.mxu0
        %v1075 = vadd.f32 0.0, %v1074
        %v1076 = vpop.f32.mrf.mxu0
        %1077 = vmatprep.mubr.f32.mxu0 %v791
        %1078 = vmatmul.mubr.f32.gmra.mxu0 %v790
        %v1079 = vpop.f32.mrf.mxu0
        %v1080 = vadd.f32 0.0, %v1079
        %v1081 = vpop.f32.mrf.mxu0
        %1082 = vmatprep.mubr.f32.mxu0 %v793
        %1083 = vmatmul.mubr.f32.gmra.mxu0 %v792
        %v1084 = vpop.f32.mrf.mxu0
        %v1085 = vadd.f32 0.0, %v1084
        %v1086 = vpop.f32.mrf.mxu0
        %1087 = vmatprep.mubr.f32.mxu0 %v795
        %1088 = vmatmul.mubr.f32.gmra.mxu0 %v794
        %v1089 = vpop.f32.mrf.mxu0
        %v1090 = vadd.f32 0.0, %v1089
        %v1091 = vpop.f32.mrf.mxu0
        %1092 = vmatprep.mubr.f32.mxu0 %v797
        %1093 = vmatmul.mubr.f32.gmra.mxu0 %v796
        %v1094 = vpop.f32.mrf.mxu0
        %v1095 = vadd.f32 0.0, %v1094
        %v1096 = vpop.f32.mrf.mxu0
        %1097 = vmatprep.mubr.f32.mxu0 %v799
        %1098 = vmatmul.mubr.f32.gmra.mxu0 %v798
        %v1099 = vpop.f32.mrf.mxu0
        %v1100 = vadd.f32 0.0, %v1099
        %v1101 = vpop.f32.mrf.mxu0
        %1102 = vmatprep.mubr.f32.mxu0 %v801
        %1103 = vmatmul.mubr.f32.gmra.mxu0 %v800
        %v1104 = vpop.f32.mrf.mxu0
        %v1105 = vadd.f32 0.0, %v1104
        %v1106 = vpop.f32.mrf.mxu0
        %1107 = vmatprep.mubr.f32.mxu0 %v803
        %1108 = vmatmul.mubr.f32.gmra.mxu0 %v802
        %v1109 = vpop.f32.mrf.mxu0
        %v1110 = vadd.f32 0.0, %v1109
        %v1111 = vpop.f32.mrf.mxu0
        %1112 = vmatprep.mubr.f32.mxu0 %v805
        %1113 = vmatmul.mubr.f32.gmra.mxu0 %v804
        %v1114 = vpop.f32.mrf.mxu0
        %v1115 = vadd.f32 0.0, %v1114
        %v1116 = vpop.f32.mrf.mxu0
        %1117 = vmatprep.mubr.f32.mxu0 %v807
        %1118 = vmatmul.mubr.f32.gmra.mxu0 %v806
        %v1119 = vpop.f32.mrf.mxu0
        %v1120 = vadd.f32 0.0, %v1119
        %v1121 = vpop.f32.mrf.mxu0
        %1122 = vdwg.mxu0
        %v1123 = vmul.f32 %v890, %v844
        %v1124 = vmul.f32 %v891, %v881
        %1125 = vxpose.xlu0.b32.start [1/16] %v965, 128
        %1126 = vxpose.xlu0.b32.cont [2/16] %v970, 128
        %1127 = vxpose.xlu0.b32.cont [3/16] %v975, 128
        %1128 = vxpose.xlu0.b32.cont [4/16] %v980, 128
        %1129 = vxpose.xlu0.b32.cont [5/16] %v985, 128
        %1130 = vxpose.xlu0.b32.cont [6/16] %v990, 128
        %1131 = vxpose.xlu0.b32.cont [7/16] %v995, 128
        %1132 = vxpose.xlu0.b32.cont [8/16] %v1000, 128
        %1133 = vxpose.xlu0.b32.cont [9/16] %v1005, 128
        %1134 = vxpose.xlu0.b32.cont [10/16] %v1010, 128
        %1135 = vxpose.xlu0.b32.cont [11/16] %v1015, 128
        %1136 = vxpose.xlu0.b32.cont [12/16] %v1020, 128
        %1137 = vxpose.xlu0.b32.cont [13/16] %v1025, 128
        %1138 = vxpose.xlu0.b32.cont [14/16] %v1030, 128
        %1139 = vxpose.xlu0.b32.cont [15/16] %v1035, 128
        %1140 = vxpose.xlu0.b32.end [16/16] %v1040, 128
        %v1141 = vpop.trf.xlu0
        %v1142 = vpop.trf.xlu0
        %v1143 = vpop.trf.xlu0
        %v1144 = vpop.trf.xlu0
        %v1145 = vpop.trf.xlu0
        %v1146 = vpop.trf.xlu0
        %v1147 = vpop.trf.xlu0
        %v1148 = vpop.trf.xlu0
        %v1149 = vpop.trf.xlu0
        %v1150 = vpop.trf.xlu0
        %v1151 = vpop.trf.xlu0
        %v1152 = vpop.trf.xlu0
        %v1153 = vpop.trf.xlu0
        %v1154 = vpop.trf.xlu0
        %v1155 = vpop.trf.xlu0
        %v1156 = vpop.trf.xlu0
        %1157 = vxpose.xlu0.b32.start [1/16] %v1045, 128
        %1158 = vxpose.xlu0.b32.cont [2/16] %v1050, 128
        %1159 = vxpose.xlu0.b32.cont [3/16] %v1055, 128
        %1160 = vxpose.xlu0.b32.cont [4/16] %v1060, 128
        %1161 = vxpose.xlu0.b32.cont [5/16] %v1065, 128
        %1162 = vxpose.xlu0.b32.cont [6/16] %v1070, 128
        %1163 = vxpose.xlu0.b32.cont [7/16] %v1075, 128
        %1164 = vxpose.xlu0.b32.cont [8/16] %v1080, 128
        %1165 = vxpose.xlu0.b32.cont [9/16] %v1085, 128
        %1166 = vxpose.xlu0.b32.cont [10/16] %v1090, 128
        %1167 = vxpose.xlu0.b32.cont [11/16] %v1095, 128
        %1168 = vxpose.xlu0.b32.cont [12/16] %v1100, 128
        %1169 = vxpose.xlu0.b32.cont [13/16] %v1105, 128
        %1170 = vxpose.xlu0.b32.cont [14/16] %v1110, 128
        %1171 = vxpose.xlu0.b32.cont [15/16] %v1115, 128
        %1172 = vxpose.xlu0.b32.end [16/16] %v1120, 128
        %v1173 = vpop.trf.xlu0
        %v1174 = vpop.trf.xlu0
        %v1175 = vpop.trf.xlu0
        %v1176 = vpop.trf.xlu0
        %v1177 = vpop.trf.xlu0
        %v1178 = vpop.trf.xlu0
        %v1179 = vpop.trf.xlu0
        %v1180 = vpop.trf.xlu0
        %v1181 = vpop.trf.xlu0
        %v1182 = vpop.trf.xlu0
        %v1183 = vpop.trf.xlu0
        %v1184 = vpop.trf.xlu0
        %v1185 = vpop.trf.xlu0
        %v1186 = vpop.trf.xlu0
        %v1187 = vpop.trf.xlu0
        %v1188 = vpop.trf.xlu0
        %v1191 = vrot.slane %v1141, 6
        %v1192 = vrot.slane %v1173, 6
        %v1195 = vsub.f32 %v1123, %v1191
        %v1196 = vsub.f32 %v1124, %v1192
        %v1197 = vmul.f32 %v1195, %v888
        %v1198 = vmul.f32 %v1196, %v889
        %v1201 = vrot.slane %v1197, 2
        %v1202 = vrot.slane %v1198, 2
        %v1204 = vsel %vm384, %v198, 0
        %v1207 = vsel %vm384, %v199, 0
        %v1210 = vsel %vm384, %v200, 0
        %v1213 = vsel %vm384, %v201, 0
        %v1215 = vsel %vm279, %v1201, 0
        %v1217 = vsel %vm279, %v1202, 0
        %1219 = vmatprep.subr.mxu0 0.0
        %1220 = vmatpush1.msra.mxu0 0.0
        %1221 = vmatprep.subr.mxu0 0.0
        %1222 = vmatpush1.msra.mxu0 0.0
        %1223 = vmatprep.subr.mxu0 0.0
        %1224 = vmatpush1.msra.mxu0 0.0
        %1225 = vmatprep.subr.mxu0 0.0
        %1226 = vmatpush1.msra.mxu0 0.0
        %1227 = vmatprep.subr.mxu0 0.0
        %1228 = vmatpush1.msra.mxu0 0.0
        %1229 = vmatprep.subr.mxu0 0.0
        %1230 = vmatpush1.msra.mxu0 0.0
        %1231 = vmatprep.subr.mxu0 0.0
        %1232 = vmatpush1.msra.mxu0 0.0
        %1233 = vmatprep.subr.mxu0 0.0
        %1234 = vmatpush1.msra.mxu0 0.0
        %1235 = vmatprep.subr.mxu0 0.0
        %1236 = vmatpush1.msra.mxu0 0.0
        %1237 = vmatprep.subr.mxu0 0.0
        %1238 = vmatpush1.msra.mxu0 0.0
        %1239 = vmatprep.subr.mxu0 0.0
        %1240 = vmatpush1.msra.mxu0 0.0
        %1241 = vmatprep.subr.mxu0 0.0
        %1242 = vmatpush1.msra.mxu0 0.0
        %1243 = vmatprep.subr.mxu0 0.0
        %1244 = vmatpush1.msra.mxu0 0.0
        %1245 = vmatprep.subr.mxu0 0.0
        %1246 = vmatpush1.msra.mxu0 0.0
        %1247 = vmatprep.subr.mxu0 0.0
        %1248 = vmatpush1.msra.mxu0 0.0
        %1249 = vmatprep.subr.mxu0 %v1217
        %1250 = vmatpush1.msra.mxu0 %v1215
        %1251 = vmatprep.subr.mxu0 0.0
        %1252 = vmatpush2.msra.mxu0 0.0
        %1253 = vmatprep.subr.mxu0 0.0
        %1254 = vmatpush2.msra.mxu0 0.0
        %1255 = vmatprep.subr.mxu0 0.0
        %1256 = vmatpush2.msra.mxu0 0.0
        %1257 = vmatprep.subr.mxu0 0.0
        %1258 = vmatpush2.msra.mxu0 0.0
        %1259 = vmatprep.subr.mxu0 0.0
        %1260 = vmatpush2.msra.mxu0 0.0
        %1261 = vmatprep.subr.mxu0 0.0
        %1262 = vmatpush2.msra.mxu0 0.0
        %1263 = vmatprep.subr.mxu0 0.0
        %1264 = vmatpush2.msra.mxu0 0.0
        %1265 = vmatprep.subr.mxu0 0.0
        %1266 = vmatpush2.msra.mxu0 0.0
        %1267 = vmatprep.subr.mxu0 0.0
        %1268 = vmatpush2.msra.mxu0 0.0
        %1269 = vmatprep.subr.mxu0 0.0
        %1270 = vmatpush2.msra.mxu0 0.0
        %1271 = vmatprep.subr.mxu0 0.0
        %1272 = vmatpush2.msra.mxu0 0.0
        %1273 = vmatprep.subr.mxu0 0.0
        %1274 = vmatpush2.msra.mxu0 0.0
        %1275 = vmatprep.subr.mxu0 0.0
        %1276 = vmatpush2.msra.mxu0 0.0
        %1277 = vmatprep.subr.mxu0 0.0
        %1278 = vmatpush2.msra.mxu0 0.0
        %1279 = vmatprep.subr.mxu0 0.0
        %1280 = vmatpush2.msra.mxu0 0.0
        %1281 = vmatprep.subr.mxu0 0.0
        %1282 = vmatpush2.msra.mxu0 0.0
        %1283 = vmatprep.mubr.f32.mxu0 0.0
        %1284 = vmatmul.mubr.f32.gmra.mxu0 %v1204
        %v1285 = vpop.f32.mrf.mxu0
        %v1286 = vadd.f32 0.0, %v1285
        %v1287 = vpop.f32.mrf.mxu0
        %v1288 = vadd.f32 0.0, %v1287
        %1289 = vmatprep.mubr.f32.mxu0 0.0
        %1290 = vmatmul.mubr.f32.gmra.mxu0 %v1207
        %v1291 = vpop.f32.mrf.mxu0
        %v1292 = vadd.f32 0.0, %v1291
        %v1293 = vpop.f32.mrf.mxu0
        %v1294 = vadd.f32 0.0, %v1293
        %1295 = vmatprep.mubr.f32.mxu0 0.0
        %1296 = vmatmul.mubr.f32.gmra.mxu0 %v1210
        %v1297 = vpop.f32.mrf.mxu0
        %v1298 = vadd.f32 0.0, %v1297
        %v1299 = vpop.f32.mrf.mxu0
        %v1300 = vadd.f32 0.0, %v1299
        %1301 = vmatprep.mubr.f32.mxu0 0.0
        %1302 = vmatmul.mubr.f32.gmra.mxu0 %v1213
        %v1303 = vpop.f32.mrf.mxu0
        %v1304 = vadd.f32 0.0, %v1303
        %v1305 = vpop.f32.mrf.mxu0
        %v1306 = vadd.f32 0.0, %v1305
        %1307 = vdwg.mxu0
        %v1308 = vadd.f32 %v189, %v1286
        %v1309 = vadd.f32 %v190, %v1288
        %v1310 = vadd.f32 %v191, %v1292
        %v1311 = vadd.f32 %v192, %v1294
        %v1312 = vadd.f32 %v193, %v1298
        %v1313 = vadd.f32 %v194, %v1300
        %v1314 = vadd.f32 %v195, %v1304
        %v1315 = vadd.f32 %v196, %v1306
        %1316 = vst [vmem:[%s188] sm:$0xff] %v1308
        %1317 = vst [vmem:[%s188 + $0x8] sm:$0xff] %v1309
        %1318 = vst [vmem:[%s188 + $0x10] sm:$0xff] %v1310
        %1319 = vst [vmem:[%s188 + $0x18] sm:$0xff] %v1311
        %1320 = vst [vmem:[%s188 + $0x20] sm:$0xff] %v1312
        %1321 = vst [vmem:[%s188 + $0x28] sm:$0xff] %v1313
        %1322 = vst [vmem:[%s188 + $0x30] sm:$0xff] %v1314
        %1323 = vst [vmem:[%s188 + $0x38] sm:$0xff] %v1315
        %s1324 = sand.u32 %s96, 1
        %s1325 = scalar_lea.sflag [#allocation4], %s1324
        %s1326 = sand.u32 %s96, 1
        %s1327 = smul.addr %s1326, 64
        %s1328 = scalar_lea.vmem [#allocation5], %s1327
        // Predicated region
        $region37: #{tpu_custom_call.1} parent=31 // pred_check
          %p1329 = pneg %p106
        $region38: #{tpu_custom_call.1} parent=31 // pred_check_branch
          %1331 = sbr.rel (%p1329) target = $region40
        $region39: #{tpu_custom_call.1} parent=31 // pred_region
          %s1333 = ssub.s32 1024, 1024
          %1334 = vsyncadd %s1325, %s1333
          %s1335 = smul.addr %s20, 8
          %s1336 = smul.addr %s1335, 128
          %s1337 = scalar_lea.hbm %s3, %s1336
          %s1338 = sshll.u32 %s1328, 4
          %s1339 = int_to_ptr.vmem [resolvable:$true] %s1338
          %1344 = dma.vmem_to_hbm [thread:$0]  %s1339, 1024, %s1337, %s1325, 256, 256, 16
        $region40: #{tpu_custom_call.1} parent=31 // pred_fallthru
          _
      $region32: #{tpu_custom_call.1} parent=5 // pred_fallthru
        _
      %p1345 = scmp.le.s32.totalorder 2, %s15
      // Predicated region
      $region41: #{tpu_custom_call.1} parent=5 // pred_check
        %p1346 = pneg %p1345
      $region42: #{tpu_custom_call.1} parent=5 // pred_check_branch
        %1348 = sbr.rel (%p1346) target = $region44
      $region43: #{tpu_custom_call.1} parent=5 // pred_region
        %s1349 = ssub.s32 %s15, 2
        // Predicated region
        $region45: #{tpu_custom_call.1} parent=43 // pred_check
          %p1350 = pneg %p112
        $region46: #{tpu_custom_call.1} parent=43 // pred_check_branch
          %1352 = sbr.rel (%p1350) target = $region48
        $region47: #{tpu_custom_call.1} parent=43 // pred_region
          %s1353 = sand.u32 %s97, 1
          %s1354 = scalar_lea.sflag [#allocation4], %s1353
          %s1355 = sand.u32 %s97, 1
          %s1356 = smul.addr %s1355, 64
          %s1357 = scalar_lea.vmem [#allocation5], %s1356
          %1358 = dma.done %s1354, 1024
        $region48: #{tpu_custom_call.1} parent=43 // pred_fallthru
          _
      $region44: #{tpu_custom_call.1} parent=5 // pred_fallthru
        _
    $region6: #{tpu_custom_call.1} parent=1 // loop_footer
      %s19 = sadd.s32 1, %s15
    $region7: #{tpu_custom_call.1} parent=1 // loop_footer_branch
      %14 = sbr.rel target = $region3
    $region8: #{tpu_custom_call.1} parent=1 // loop_exit
      _
    %1359 = vsyncpa [#allocation3], 1
    %s1360 = scalar_lea.sflag [#allocation3], 1
    %1361 = vsyncpa %s1360, 1
    %1362 = vsyncpa [#allocation4], 1
    %s1363 = scalar_lea.sflag [#allocation4], 1
    %1364 = vsyncpa %s1363, 1

</llo_original>
